<compile_context>
chip_gen: v6e
topology: v6e:2x2x1
jax: 0.10.0
libtpu: 0.0.40
codegen_flags: <defaults>
</compile_context>

<pallas_src>
import functools
import math

import jax
import jax.numpy as jnp
from jax.experimental import pallas as pl
from jax.experimental.pallas import tpu as pltpu


# ---------------------------------------------------------------------------
# Kernel: one row-tile of the folded patch matrix  x  (block-diagonal) weight,
# plus bias.  MXU matmul with f32 accumulation.
# ---------------------------------------------------------------------------
def _matmul_bias_kernel(p_ref, w_ref, b_ref, o_ref):
    # p_ref: (tmf, gK); w_ref: (gK, gE); b_ref: (1, gE) f32; o_ref: (tmf, gE)
    acc = jnp.dot(p_ref[...], w_ref[...], preferred_element_type=jnp.float32)
    o_ref[...] = (acc + b_ref[...]).astype(o_ref.dtype)


# ---------------------------------------------------------------------------
# Small static helpers (run at trace time on Python ints).
# ---------------------------------------------------------------------------
def _cdiv(a, b):
    return -(-a // b)


def _round_up(a, m):
    return ((a + m - 1) // m) * m


def _sublane(dtype):
    # native packed-sublane tile height: f32 -> 8, bf16 -> 16, int8/fp8 -> 32
    return max(8, 32 // jnp.dtype(dtype).itemsize)


def _vmem_policy():
    """(tile budget bytes, row-tile cap, vmem_limit_bytes) per TPU generation."""
    try:
        vmem_cap = int(pltpu.get_tpu_info().vmem_capacity_bytes)
    except Exception:
        vmem_cap = 64 * 1024 * 1024  # conservative (v7x-sized) fallback
    if vmem_cap >= 100 * 1024 * 1024:
        # v5e / v6e: 128 MiB physical VMEM -> generous budget, 2048-row cap
        return 48 * 1024 * 1024, 2048, 64 * 1024 * 1024
    # v7x: 64 MiB physical, 3.2 TB/s HBM -> bigger row tiles (4096) to amortize
    # the ~0.35 us per-grid-step overhead, but a tighter absolute budget.
    return 32 * 1024 * 1024, 4096, 44 * 1024 * 1024


def _fold_factor(embed_dim, num_patches):
    # Smallest g with g*E a multiple of 128 (lane width); must divide Np so the
    # fold is a pure row-major reinterpretation for any batch size.
    g = math.lcm(embed_dim, 128) // embed_dim
    return g if (num_patches % g == 0) else 1


def _pick_row_tile(Mf, gK, gE, in_bytes, out_bytes, sub, budget, cap):
    """Pick the folded-row tile size.

    Rules (perf review): biggest tile that fits the VMEM budget INCLUDING the
    resident weight/bias, dtype-aware sublane rounding, >=2 grid steps when M
    allows, and an EVEN realized step count (dual-TensorCore balance on v7x).
    """
    if Mf <= 2 * sub:
        return Mf  # tiny problem: single block (full-extent block is always legal)

    # resident weight + bias (assume the pipeline double-buffers them; we do not
    # rely on pipeline_mode=pl.Buffered(1) for lowering robustness, so budget 2x)
    resident = 2 * (gK * gE * in_bytes + gE * 4)

    def need(t):
        return 2 * t * (gK * in_bytes + gE * out_bytes) + resident

    steps = max(2, 2 * _cdiv(Mf, 2 * cap))            # even, respects the cap
    tmf = min(_round_up(_cdiv(Mf, steps), sub), _round_up(Mf, sub))
    while tmf > sub and need(tmf) > budget:
        steps += 2
        tmf = _round_up(_cdiv(Mf, steps), sub)
    # keep the realized step count even when possible (shrinking only reduces VMEM)
    while tmf > sub and _cdiv(Mf, tmf) > 1 and _cdiv(Mf, tmf) % 2 == 1:
        tmf -= sub
    return max(tmf, sub)


# ---------------------------------------------------------------------------
# One-time (hoisted) parameter preparation.
# ---------------------------------------------------------------------------
def prepare_patch_embed_params(weight, bias, *, patch_size, num_patches,
                               compute_dtype=jnp.float32):
    """Flatten the conv weight and make the kernel's output lane-dense.

    Returns (w_mat, b_mat, fold):
      * fold > 1 : w_mat is block-diagonal (g*K, g*E); g consecutive patch rows
        fold into the lane dim (exact, all reshapes are free row-major views).
      * fold == 1: E is zero-padded up to a multiple of 128 instead (keeps
        unmasked vst); the apply() wrapper slices the padding back off.
    compute_dtype=jnp.bfloat16 selects the bf16 fast path (numerics change).
    """
    E, C, ph, pw = weight.shape
    assert (ph, pw) == tuple(patch_size)
    K = C * ph * pw
    g = _fold_factor(E, num_patches)
    w_mat = weight.reshape(E, K).T.astype(jnp.float32)          # (K, E), K order (c, kh, kw)
    if g > 1:
        w_out = jnp.kron(jnp.eye(g, dtype=w_mat.dtype), w_mat)  # (g*K, g*E) block-diag
        b_out = jnp.tile(bias.astype(jnp.float32), g).reshape(1, g * E)
    else:
        e_pad = _round_up(E, 128)
        w_out = jnp.zeros((K, e_pad), jnp.float32).at[:, :E].set(w_mat)
        b_out = jnp.zeros((1, e_pad), jnp.float32).at[:, :E].set(bias.astype(jnp.float32))
    # Bias stays f32 (added to the f32 accumulator); weight follows compute dtype.
    return w_out.astype(compute_dtype), b_out, g


# ---------------------------------------------------------------------------
# Forward pass.
# ---------------------------------------------------------------------------
@functools.partial(jax.jit, static_argnames=("patch_size", "embed_dim", "fold"))
def patch_embed_apply(x, w_bd, b_f, *, patch_size, embed_dim, fold):
    """x: (B, C, H, W); w_bd/b_f from prepare_patch_embed_params.  Returns (B, Np, E)."""
    B, C, H, W = x.shape
    ph, pw = patch_size
    E = embed_dim
    g = fold
    assert H % ph == 0 and W % pw == 0, "image size must be divisible by patch size"
    Ho, Wo = H // ph, W // pw
    Np = Ho * Wo
    K = C * ph * pw
    M = B * Np
    assert M % g == 0
    Mf = M // g
    gK = g * K
    gE = w_bd.shape[1]                       # g*E (fold path) or round_up(E,128) (pad path)
    cdtype = w_bd.dtype                      # compute/streaming dtype (f32 or bf16)

    # --- glue: extract non-overlapping patches in (c, kh, kw) order --------------
    # TODO(synk): consume NCHW x directly inside the kernel (or accept NHWC and
    # decompose the conv into ph matmuls); the required (c,kh)-gather / W->(Wo,pw)
    # relayout is not expressible with currently supported Mosaic reshape/transpose
    # lowerings without lane-sparse MXU operands, so this single fused XLA copy
    # (one extra HBM pass over x) remains for now.
    patches = x.reshape(B, C, Ho, ph, Wo, pw).transpose(0, 2, 4, 1, 3, 5)
    patches = patches.reshape(Mf, gK).astype(cdtype)

    # --- tile selection -----------------------------------------------------------
    in_b = jnp.dtype(cdtype).itemsize
    out_b = jnp.dtype(x.dtype).itemsize
    sub = _sublane(cdtype)
    budget, cap, vmem_limit = _vmem_policy()
    tmf = _pick_row_tile(Mf, gK, gE, in_b, out_b, sub, budget, cap)
    grid = (_cdiv(Mf, tmf),)

    cost = pl.CostEstimate(
        flops=2 * Mf * gK * gE,
        bytes_accessed=in_b * (Mf * gK + gK * gE) + 4 * gE + out_b * Mf * gE,
        transcendentals=0,
    )

    out_f = pl.pallas_call(
        _matmul_bias_kernel,
        out_shape=jax.ShapeDtypeStruct((Mf, gE), x.dtype),
        grid_spec=pltpu.PrefetchScalarGridSpec(
            num_scalar_prefetch=0,
            grid=grid,
            in_specs=[
                pl.BlockSpec((tmf, gK), lambda i: (i, 0)),
                # Constant index_map -> weight/bias stay resident across steps.
                # (pl.Buffered(1) would halve their footprint; omitted for lowering
                #  robustness, but they are counted double-buffered in the budget.)
                pl.BlockSpec((gK, gE), lambda i: (0, 0)),
                pl.BlockSpec((1, gE), lambda i: (0, 0)),
            ],
            out_specs=pl.BlockSpec((tmf, gE), lambda i: (i, 0)),
        ),
        compiler_params=pltpu.CompilerParams(
            dimension_semantics=("parallel",),
            vmem_limit_bytes=vmem_limit,
        ),
        cost_estimate=cost,
    )(patches, w_bd, b_f)

    if g > 1:
        # (Mf, g*E) row-major == (M, E) row-major == (B, Np, E): free reshape.
        return out_f.reshape(B, Np, E)
    # pad path: slice the zero-padded embedding columns back off.
    return out_f[:, :E].reshape(B, Np, E)


def patch_embed(x, weight, bias, *, patch_size, compute_dtype=jnp.float32):
    """Convenience wrapper matching the PyTorch module's forward (norm_layer=None)."""
    B, C, H, W = x.shape
    ph, pw = patch_size
    E = weight.shape[0]
    Np = (H // ph) * (W // pw)
    w_bd, b_f, g = prepare_patch_embed_params(
        weight, bias, patch_size=patch_size, num_patches=Np, compute_dtype=compute_dtype
    )
    return patch_embed_apply(x, w_bd, b_f, patch_size=patch_size, embed_dim=E, fold=g)


if __name__ == "__main__":
    # Small shapes consistent with the module: img_size=16, patch_size=4,
    # in_chans=4, embed_dim=32, batch=2  ->  x: (2, 4, 16, 16), out: (2, 16, 32)
    B, C, H, W = 2, 4, 16, 16
    ph = pw = 4
    E = 32

    key = jax.random.PRNGKey(0)
    kx, kw, kb = jax.random.split(key, 3)
    x = jax.random.normal(kx, (B, C, H, W), dtype=jnp.float32)
    fan_in = C * ph * pw
    weight = jax.random.normal(kw, (E, C, ph, pw), dtype=jnp.float32) / jnp.sqrt(fan_in)
    bias = jax.random.normal(kb, (E,), dtype=jnp.float32) * 0.01

    def conv_ref(xr, wr, br):
        phh, pww = wr.shape[2], wr.shape[3]
        r = jax.lax.conv_general_dilated(
            xr, wr, window_strides=(phh, pww), padding="VALID",
            dimension_numbers=("NCHW", "OIHW", "NCHW"),
        ) + br.reshape(1, -1, 1, 1)
        return r.reshape(r.shape[0], r.shape[1], -1).transpose(0, 2, 1)

    # 1) default f32 path (bit-matches the module numerics)
    Np = (H // ph) * (W // pw)
    w_bd, b_f, g = prepare_patch_embed_params(weight, bias, patch_size=(ph, pw), num_patches=Np)
    out = jax.block_until_ready(
        patch_embed_apply(x, w_bd, b_f, patch_size=(ph, pw), embed_dim=E, fold=g))
    ref = conv_ref(x, weight, bias)
    assert out.shape == (B, Np, E)
    assert jnp.allclose(out, ref, atol=1e-4, rtol=1e-4)

    # 2) bf16 fast path (flagged numerics change; halves the patch-stream HBM read)
    xb = jax.random.normal(kx, (8, C, H, W), dtype=jnp.float32)
    w16, b16, g16 = prepare_patch_embed_params(
        weight, bias, patch_size=(ph, pw), num_patches=Np, compute_dtype=jnp.bfloat16)
    out16 = jax.block_until_ready(
        patch_embed_apply(xb, w16, b16, patch_size=(ph, pw), embed_dim=E, fold=g16))
    ref16 = conv_ref(xb, weight, bias)
    assert out16.shape == (8, Np, E)
    assert jnp.allclose(out16, ref16, atol=5e-2, rtol=5e-2)

    # 3) lane-density fallback: Np not divisible by the fold -> zero-padded E path
    Hp = Wp = 12                                    # Np = 9, not divisible by g = 4
    xp = jax.random.normal(kx, (B, C, Hp, Wp), dtype=jnp.float32)
    Np2 = (Hp // ph) * (Wp // pw)
    wp, bp, gp = prepare_patch_embed_params(weight, bias, patch_size=(ph, pw), num_patches=Np2)
    assert gp == 1
    outp = jax.block_until_ready(
        patch_embed_apply(xp, wp, bp, patch_size=(ph, pw), embed_dim=E, fold=gp))
    refp = conv_ref(xp, weight, bias)
    assert outp.shape == (B, Np2, E)
    assert jnp.allclose(outp, refp, atol=1e-4, rtol=1e-4)

    print("KERNEL_OK")
</pallas_src>

<mosaic_0001>
module attributes {stable_mosaic.version = 11 : i64} {
  func.func @_matmul_bias_kernel(%arg0: i32, %arg1: memref<8x256xf32, #tpu.memory_space<vmem>>, %arg2: memref<256x128xf32, #tpu.memory_space<vmem>>, %arg3: memref<1x128xf32, #tpu.memory_space<vmem>>, %arg4: memref<8x128xf32, #tpu.memory_space<vmem>>) attributes {dimension_semantics = [#tpu.dimension_semantics<parallel>], iteration_bounds = array<i64: 1>, scalar_prefetch = 0 : i64, scratch_operands = 0 : i64, tpu.core_type = #tpu.core_type<tc>, window_params = [{transform_indices = @transform_0, window_bounds = array<i64: 8, 256>}, {pipeline_mode = #tpu.pipeline_mode<synchronous>, transform_indices = @transform_1, window_bounds = array<i64: 256, 128>}, {pipeline_mode = #tpu.pipeline_mode<synchronous>, transform_indices = @transform_2, window_bounds = array<i64: 1, 128>}, {transform_indices = @transform_3, window_bounds = array<i64: 8, 128>}]} {
    %c0 = arith.constant 0 : index
    %c0_0 = arith.constant 0 : index
    %0 = vector.load %arg1[%c0, %c0_0] : memref<8x256xf32, #tpu.memory_space<vmem>>, vector<8x256xf32>
    %c0_1 = arith.constant 0 : index
    %c0_2 = arith.constant 0 : index
    %1 = vector.load %arg2[%c0_1, %c0_2] : memref<256x128xf32, #tpu.memory_space<vmem>>, vector<256x128xf32>
    %cst = arith.constant dense<0.000000e+00> : vector<8x128xf32>
    %2 = tpu.matmul %0, %1, %cst {dimension_numbers = #tpu.dot_dimension_numbers<[1], [0], [0], [1], [0, 0, 1, 1], [], []>} : vector<8x256xf32>, vector<256x128xf32>, vector<8x128xf32> -> vector<8x128xf32>
    %c0_3 = arith.constant 0 : index
    %c0_4 = arith.constant 0 : index
    %3 = vector.load %arg3[%c0_3, %c0_4] : memref<1x128xf32, #tpu.memory_space<vmem>>, vector<1x128xf32>
    %4 = vector.broadcast %3 : vector<1x128xf32> to vector<8x128xf32>
    %5 = arith.addf %2, %4 : vector<8x128xf32>
    %c0_5 = arith.constant 0 : index
    %c0_6 = arith.constant 0 : index
    %6 = vector.load %arg4[%c0_5, %c0_6] : memref<8x128xf32, #tpu.memory_space<vmem>>, vector<8x128xf32>
    tpu.vector_store %arg4[%c0_5, %c0_6], %5 {strides = array<i32>} : memref<8x128xf32, #tpu.memory_space<vmem>>, vector<8x128xf32>,
    return
  }
  func.func @transform_0(%arg0: i32) -> (i32, i32) {
    %c0_i32 = arith.constant 0 : i32
    %c0_i32_0 = arith.constant 0 : i32
    return %arg0, %c0_i32 : i32, i32
  }
  func.func @transform_1(%arg0: i32) -> (i32, i32) {
    %c0_i32 = arith.constant 0 : i32
    %c0_i32_0 = arith.constant 0 : i32
    %c0_i32_1 = arith.constant 0 : i32
    return %c0_i32, %c0_i32_0 : i32, i32
  }
  func.func @transform_2(%arg0: i32) -> (i32, i32) {
    %c0_i32 = arith.constant 0 : i32
    %c0_i32_0 = arith.constant 0 : i32
    %c0_i32_1 = arith.constant 0 : i32
    return %c0_i32, %c0_i32_0 : i32, i32
  }
  func.func @transform_3(%arg0: i32) -> (i32, i32) {
    %c0_i32 = arith.constant 0 : i32
    %c0_i32_0 = arith.constant 0 : i32
    return %arg0, %c0_i32 : i32, i32
  }
}

</mosaic_0001>

<llo_original>
// kernel: patch_embed_apply.1
$region0: #{patch_embed_apply.1}
  #allocation0 [shape = 'u32[]', space=smem, size = 0x4, offset = 0x4, fixed_abs, tag = 'smem constant byte address 0x4 - core index']
  #allocation1 [shape = 'u32[144,128]{1,0:T(1,128)}', space=vmem, size = 0x12000, scoped, tag = 'internal scratch']
  %s0 = inlined_call_operand.vmem [shape: f32[8,256], index: 0, kind: input, shape index: {}]
  %s1 = inlined_call_operand.vmem [shape: f32[256,128], index: 1, kind: input, shape index: {}]
  %s2 = inlined_call_operand.vmem [shape: f32[1,128], index: 2, kind: input, shape index: {}]
  %s3 = inlined_call_operand.vmem [shape: f32[8,128], index: 3, kind: output, shape index: {}]
  %s4 = sld [smem:[#allocation0]]
  $region22: #{patch_embed_apply.1} parent=0
    _
  %s6 = ssub.s32 1, %s4
  %s7 = scalar_select 0, %s6, %s4
  // Predicated region
  $region2: #{patch_embed_apply.1} parent=0 // pred_check
    _
  $region3: #{patch_embed_apply.1} parent=0 // pred_check_branch
    %9 = sbr.rel (0) target = $region5
  $region4: #{patch_embed_apply.1} parent=0 // pred_region
    _
  $region5: #{patch_embed_apply.1} parent=0 // pred_fallthru
    _
  // Predicated region
  $region6: #{patch_embed_apply.1} parent=0 // pred_check
    _
  $region7: #{patch_embed_apply.1} parent=0 // pred_check_branch
    %11 = sbr.rel (0) target = $region9
  $region8: #{patch_embed_apply.1} parent=0 // pred_region
    _
  $region9: #{patch_embed_apply.1} parent=0 // pred_fallthru
    _
  // Predicated region
  $region10: #{patch_embed_apply.1} parent=0 // pred_check
    _
  $region11: #{patch_embed_apply.1} parent=0 // pred_check_branch
    %13 = sbr.rel (0) target = $region13
  $region12: #{patch_embed_apply.1} parent=0 // pred_region
    _
  $region13: #{patch_embed_apply.1} parent=0 // pred_fallthru
    _
  %v14 = vld [vmem:[%s0] sm:$0xff]
  %v15 = vld [vmem:[%s0 + $0x8] sm:$0xff]
  %v16 = vld [vmem:[%s1] sm:$0xff]
  %v17 = vld [vmem:[%s1 + $0x8] sm:$0xff]
  %v18 = vld [vmem:[%s1 + $0x10] sm:$0xff]
  %v19 = vld [vmem:[%s1 + $0x18] sm:$0xff]
  %v20 = vld [vmem:[%s1 + $0x20] sm:$0xff]
  %v21 = vld [vmem:[%s1 + $0x28] sm:$0xff]
  %v22 = vld [vmem:[%s1 + $0x30] sm:$0xff]
  %v23 = vld [vmem:[%s1 + $0x38] sm:$0xff]
  %v24 = vld [vmem:[%s1 + $0x40] sm:$0xff]
  %v25 = vld [vmem:[%s1 + $0x48] sm:$0xff]
  %v26 = vld [vmem:[%s1 + $0x50] sm:$0xff]
  %v27 = vld [vmem:[%s1 + $0x58] sm:$0xff]
  %v28 = vld [vmem:[%s1 + $0x60] sm:$0xff]
  %v29 = vld [vmem:[%s1 + $0x68] sm:$0xff]
  %v30 = vld [vmem:[%s1 + $0x70] sm:$0xff]
  %v31 = vld [vmem:[%s1 + $0x78] sm:$0xff]
  %v32 = vld [vmem:[%s1 + $0x80] sm:$0xff]
  %v33 = vld [vmem:[%s1 + $0x88] sm:$0xff]
  %v34 = vld [vmem:[%s1 + $0x90] sm:$0xff]
  %v35 = vld [vmem:[%s1 + $0x98] sm:$0xff]
  %v36 = vld [vmem:[%s1 + $0xa0] sm:$0xff]
  %v37 = vld [vmem:[%s1 + $0xa8] sm:$0xff]
  %v38 = vld [vmem:[%s1 + $0xb0] sm:$0xff]
  %v39 = vld [vmem:[%s1 + $0xb8] sm:$0xff]
  %v40 = vld [vmem:[%s1 + $0xc0] sm:$0xff]
  %v41 = vld [vmem:[%s1 + $0xc8] sm:$0xff]
  %v42 = vld [vmem:[%s1 + $0xd0] sm:$0xff]
  %v43 = vld [vmem:[%s1 + $0xd8] sm:$0xff]
  %v44 = vld [vmem:[%s1 + $0xe0] sm:$0xff]
  %v45 = vld [vmem:[%s1 + $0xe8] sm:$0xff]
  %v46 = vld [vmem:[%s1 + $0xf0] sm:$0xff]
  %v47 = vld [vmem:[%s1 + $0xf8] sm:$0xff]
  %v48 = vld [vmem:[%s2] sm:$0x1]
  %v50 = vlaneseq
  %v51 = vshrl.u32 %v50, 7
  %v52 = vsub.s32 0, %v51
  %v53 = vrot.slane %v48, %v52
  %55 = vmatprep.subr.mxu0 0.0
  %56 = vmatpush1.msra.mxu0 %v31
  %57 = vmatprep.subr.mxu0 0.0
  %58 = vmatpush1.msra.mxu0 %v30
  %59 = vmatprep.subr.mxu0 0.0
  %60 = vmatpush1.msra.mxu0 %v29
  %61 = vmatprep.subr.mxu0 0.0
  %62 = vmatpush1.msra.mxu0 %v28
  %63 = vmatprep.subr.mxu0 0.0
  %64 = vmatpush1.msra.mxu0 %v27
  %65 = vmatprep.subr.mxu0 0.0
  %66 = vmatpush1.msra.mxu0 %v26
  %67 = vmatprep.subr.mxu0 0.0
  %68 = vmatpush1.msra.mxu0 %v25
  %69 = vmatprep.subr.mxu0 0.0
  %70 = vmatpush1.msra.mxu0 %v24
  %71 = vmatprep.subr.mxu0 0.0
  %72 = vmatpush1.msra.mxu0 %v23
  %73 = vmatprep.subr.mxu0 0.0
  %74 = vmatpush1.msra.mxu0 %v22
  %75 = vmatprep.subr.mxu0 0.0
  %76 = vmatpush1.msra.mxu0 %v21
  %77 = vmatprep.subr.mxu0 0.0
  %78 = vmatpush1.msra.mxu0 %v20
  %79 = vmatprep.subr.mxu0 0.0
  %80 = vmatpush1.msra.mxu0 %v19
  %81 = vmatprep.subr.mxu0 0.0
  %82 = vmatpush1.msra.mxu0 %v18
  %83 = vmatprep.subr.mxu0 0.0
  %84 = vmatpush1.msra.mxu0 %v17
  %85 = vmatprep.subr.mxu0 0.0
  %86 = vmatpush1.msra.mxu0 %v16
  %87 = vmatprep.subr.mxu0 0.0
  %88 = vmatpush2.msra.mxu0 %v47
  %89 = vmatprep.subr.mxu0 0.0
  %90 = vmatpush2.msra.mxu0 %v46
  %91 = vmatprep.subr.mxu0 0.0
  %92 = vmatpush2.msra.mxu0 %v45
  %93 = vmatprep.subr.mxu0 0.0
  %94 = vmatpush2.msra.mxu0 %v44
  %95 = vmatprep.subr.mxu0 0.0
  %96 = vmatpush2.msra.mxu0 %v43
  %97 = vmatprep.subr.mxu0 0.0
  %98 = vmatpush2.msra.mxu0 %v42
  %99 = vmatprep.subr.mxu0 0.0
  %100 = vmatpush2.msra.mxu0 %v41
  %101 = vmatprep.subr.mxu0 0.0
  %102 = vmatpush2.msra.mxu0 %v40
  %103 = vmatprep.subr.mxu0 0.0
  %104 = vmatpush2.msra.mxu0 %v39
  %105 = vmatprep.subr.mxu0 0.0
  %106 = vmatpush2.msra.mxu0 %v38
  %107 = vmatprep.subr.mxu0 0.0
  %108 = vmatpush2.msra.mxu0 %v37
  %109 = vmatprep.subr.mxu0 0.0
  %110 = vmatpush2.msra.mxu0 %v36
  %111 = vmatprep.subr.mxu0 0.0
  %112 = vmatpush2.msra.mxu0 %v35
  %113 = vmatprep.subr.mxu0 0.0
  %114 = vmatpush2.msra.mxu0 %v34
  %115 = vmatprep.subr.mxu0 0.0
  %116 = vmatpush2.msra.mxu0 %v33
  %117 = vmatprep.subr.mxu0 0.0
  %118 = vmatpush2.msra.mxu0 %v32
  %119 = vmatprep.mubr.f32.mxu0 %v15
  %120 = vmatmul.mubr.f32.gmra.mxu0 %v14
  %v121 = vpop.f32.mrf.mxu0
  %v122 = vadd.f32 %v53, %v121
  %v123 = vpop.f32.mrf.mxu0
  %124 = vdwg.mxu0
  %125 = vst [vmem:[%s3] sm:$0xff] %v122
  // Predicated region
  $region14: #{patch_embed_apply.1} parent=0 // pred_check
    _
  $region15: #{patch_embed_apply.1} parent=0 // pred_check_branch
    %127 = sbr.rel (0) target = $region17
  $region16: #{patch_embed_apply.1} parent=0 // pred_region
    _
  $region17: #{patch_embed_apply.1} parent=0 // pred_fallthru
    _
  // Predicated region
  $region18: #{patch_embed_apply.1} parent=0 // pred_check
    _
  $region19: #{patch_embed_apply.1} parent=0 // pred_check_branch
    %129 = sbr.rel (0) target = $region21
  $region20: #{patch_embed_apply.1} parent=0 // pred_region
    _
  $region21: #{patch_embed_apply.1} parent=0 // pred_fallthru
    _

</llo_original>
